<compile_context>
chip_gen: v7x
topology: tpu7x:2x2x1
jax: 0.10.0
libtpu: 0.0.40
codegen_flags: <defaults>
</compile_context>

<pallas_src>
import jax
import jax.numpy as jnp
from jax.experimental import pallas as pl
from jax.experimental.pallas import tpu as pltpu


def _round_up(x: int, m: int) -> int:
    return (x + m - 1) // m * m


def _cdiv(a: int, b: int) -> int:
    return (a + b - 1) // b


def _make_kernel(compute_dtype):
    def kernel(x_ref, w_ref, b_ref, out_ref):
        # x_ref:   (TM, F)        input dtype (cast to compute dtype on-chip)
        # w_ref:   (F, OUT_PAD)   compute dtype, fused [W_cls.T | W_bbox.T], zero-padded
        # b_ref:   (1, OUT_PAD)   f32, fused [b_cls | b_bbox], zero-padded
        # out_ref: (TM, OUT_PAD)
        x = x_ref[...]
        if compute_dtype is not None and x.dtype != compute_dtype:
            x = x.astype(compute_dtype)               # on-chip cast: free VPU filler
        acc = jnp.dot(x, w_ref[...], preferred_element_type=jnp.float32)
        out_ref[...] = (acc + b_ref[...]).astype(out_ref.dtype)
    return kernel


def _xla_box_predictor(x, w_cls, b_cls, w_bbox, b_bbox, out_dtype):
    cls = (x @ w_cls.T + b_cls).astype(out_dtype)
    bbox = (x @ w_bbox.T + b_bbox).astype(out_dtype)
    return cls, bbox


def custom_box_predictor(x, w_cls, b_cls, w_bbox, b_bbox, *,
                         compute_dtype=jnp.bfloat16,
                         out_dtype=None,
                         block_m=512,
                         force_pallas=False):
    """Fused CustomBoxPredictor forward.

    x: (N, F); w_cls: (C, F); b_cls: (C,); w_bbox: (4C, F); b_bbox: (4C,)
    Returns (cls_score, bbox_pred) with shapes (N, C), (N, 4C).
    """
    N, F = x.shape
    C = w_cls.shape[0]
    C4 = w_bbox.shape[0]
    OUT = C + C4
    out_dtype = jnp.dtype(out_dtype) if out_dtype is not None else jnp.dtype(x.dtype)

    # Tiny-shape dispatch: below a few MFLOP the fixed pallas_call / per-step overhead
    # dominates and XLA's fused dot is strictly faster.
    if not force_pallas and 2 * N * F * OUT < (1 << 22):
        return _xla_box_predictor(x, w_cls, b_cls, w_bbox, b_bbox, out_dtype)

    w_dtype = jnp.dtype(compute_dtype) if compute_dtype is not None else jnp.dtype(x.dtype)
    OUT_PAD = _round_up(OUT, 128)                     # lane-dense output slab

    # ---- one-time parameter fusion (constant-folded under jit): (F, OUT_PAD) ----
    w_fused = jnp.concatenate([w_cls.T, w_bbox.T], axis=1).astype(w_dtype)   # (F, OUT)
    w_fused = jnp.pad(w_fused, ((0, 0), (0, OUT_PAD - OUT)))                 # (F, OUT_PAD)
    b_fused = jnp.concatenate([b_cls, b_bbox], axis=0).astype(jnp.float32)
    b_fused = jnp.pad(b_fused, (0, OUT_PAD - OUT)).reshape(1, OUT_PAD)

    # ---- row tiling ----
    x_item = jnp.dtype(x.dtype).itemsize
    o_item = out_dtype.itemsize
    w_item = w_dtype.itemsize
    row_align = max(8, 32 // w_item)                  # bf16 packs 2 rows per sublane

    def working_set(tm):                              # 2x-buffered x/out, 1x weight
        return (2 * tm * F * x_item + 2 * tm * OUT_PAD * o_item
                + F * OUT_PAD * w_item + OUT_PAD * 4)

    TM = min(block_m, _round_up(N, row_align))
    # v7x megacore: aim for >= 2 grid steps so both TensorCores get work.
    if _round_up(N, row_align) <= TM and N >= 2 * row_align:
        TM = _round_up(_cdiv(N, 2), row_align)
    # Keep working set well under v7x's 64 MiB physical VMEM (32 MiB scoped default).
    VMEM_BUDGET = 40 << 20
    while TM > row_align and working_set(TM) > VMEM_BUDGET:
        TM = max(row_align, _round_up(TM // 2, row_align))

    N_PAD = _round_up(N, TM)
    x_p = x if N_PAD == N else jnp.pad(x, ((0, N_PAD - N), (0, 0)))   # no dtype cast here
    grid = (N_PAD // TM,)

    cost = pl.CostEstimate(
        flops=2 * N_PAD * F * OUT_PAD,
        transcendentals=0,
        bytes_accessed=(N_PAD * F * x_item + F * OUT_PAD * w_item
                        + OUT_PAD * 4 + N_PAD * OUT_PAD * o_item),
    )
    vmem_limit = int(min(max(working_set(TM) + (8 << 20), 32 << 20), 48 << 20))
    kernel = _make_kernel(compute_dtype)

    def call(single_buffer_consts):
        const_kw = {"pipeline_mode": pl.Buffered(1)} if single_buffer_consts else {}
        return pl.pallas_call(
            kernel,
            out_shape=jax.ShapeDtypeStruct((N_PAD, OUT_PAD), out_dtype),
            grid=grid,
            in_specs=[
                pl.BlockSpec((TM, F), lambda i: (i, 0)),                    # x: streamed
                pl.BlockSpec((F, OUT_PAD), lambda i: (0, 0), **const_kw),   # weight: resident
                pl.BlockSpec((1, OUT_PAD), lambda i: (0, 0), **const_kw),   # bias: resident
            ],
            out_specs=pl.BlockSpec((TM, OUT_PAD), lambda i: (i, 0)),
            compiler_params=pltpu.CompilerParams(
                dimension_semantics=("parallel",),     # megacore-shard N on v7x
                vmem_limit_bytes=vmem_limit,
            ),
            cost_estimate=cost,
        )(x_p, w_fused, b_fused)

    try:
        fused_out = call(True)
    except Exception:   # pragma: no cover — jax builds without Buffered(1) support
        fused_out = call(False)

    # TODO(synk): consumers under jit should take the padded slab directly so these
    # slices fuse away instead of materializing extra HBM copies in eager mode.
    cls_out = fused_out[:N, :C]
    bbox_out = fused_out[:N, C:OUT]
    return cls_out, bbox_out


if __name__ == "__main__":
    # Small shapes implied by the module: x is (batch, in_features).
    batch, in_features, num_classes = 8, 32, 4

    key = jax.random.PRNGKey(0)
    kx, kwc, kbc, kwb, kbb = jax.random.split(key, 5)

    x = jax.random.normal(kx, (batch, in_features), jnp.float32)
    # PyTorch nn.Linear weight layout: (out_features, in_features).
    w_cls = jax.random.normal(kwc, (num_classes, in_features), jnp.float32) * 0.1
    b_cls = jax.random.normal(kbc, (num_classes,), jnp.float32) * 0.1
    w_bbox = jax.random.normal(kwb, (num_classes * 4, in_features), jnp.float32) * 0.1
    b_bbox = jax.random.normal(kbb, (num_classes * 4,), jnp.float32) * 0.1

    # force_pallas: the auto-dispatch would (correctly) route this tiny shape to XLA;
    # we force the Pallas path so the kernel itself is exercised.
    cls_out, bbox_out = custom_box_predictor(
        x, w_cls, b_cls, w_bbox, b_bbox, force_pallas=True)
    jax.block_until_ready((cls_out, bbox_out))

    # Reference with the same bf16 rounding of x / W (kernel accumulates in f32).
    xb = x.astype(jnp.bfloat16).astype(jnp.float32)
    wcb = w_cls.astype(jnp.bfloat16).astype(jnp.float32)
    wbb = w_bbox.astype(jnp.bfloat16).astype(jnp.float32)
    cls_ref = xb @ wcb.T + b_cls
    bbox_ref = xb @ wbb.T + b_bbox

    assert cls_out.shape == (batch, num_classes)
    assert bbox_out.shape == (batch, num_classes * 4)
    assert cls_out.dtype == x.dtype and bbox_out.dtype == x.dtype
    assert jnp.allclose(cls_out, cls_ref, atol=2e-3, rtol=2e-3)
    assert jnp.allclose(bbox_out, bbox_ref, atol=2e-3, rtol=2e-3)
    # Loose parity against exact f32 torch nn.Linear semantics (bf16 operand rounding).
    assert jnp.allclose(cls_out, x @ w_cls.T + b_cls, atol=5e-2)
    assert jnp.allclose(bbox_out, x @ w_bbox.T + b_bbox, atol=5e-2)

    print("KERNEL_OK")
</pallas_src>

<mosaic_0001>
module attributes {stable_mosaic.version = 11 : i64} {
  func.func @kernel(%arg0: i32, %arg1: memref<16x32xf32, #tpu.memory_space<vmem>>, %arg2: memref<32x128xbf16, #tpu.memory_space<vmem>>, %arg3: memref<1x128xf32, #tpu.memory_space<vmem>>, %arg4: memref<16x128xf32, #tpu.memory_space<vmem>>) attributes {dimension_semantics = [#tpu.dimension_semantics<parallel>], iteration_bounds = array<i64: 1>, scalar_prefetch = 0 : i64, scratch_operands = 0 : i64, tpu.core_type = #tpu.core_type<tc>, window_params = [{transform_indices = @transform_0, window_bounds = array<i64: 16, 32>}, {pipeline_mode = #tpu.pipeline_mode<synchronous>, transform_indices = @transform_1, window_bounds = array<i64: 32, 128>}, {pipeline_mode = #tpu.pipeline_mode<synchronous>, transform_indices = @transform_2, window_bounds = array<i64: 1, 128>}, {transform_indices = @transform_3, window_bounds = array<i64: 16, 128>}]} {
    %c0 = arith.constant 0 : index
    %c0_0 = arith.constant 0 : index
    %0 = vector.load %arg1[%c0, %c0_0] : memref<16x32xf32, #tpu.memory_space<vmem>>, vector<16x32xf32>
    %1 = arith.truncf %0 : vector<16x32xf32> to vector<16x32xbf16>
    %c0_1 = arith.constant 0 : index
    %c0_2 = arith.constant 0 : index
    %2 = vector.load %arg2[%c0_1, %c0_2] : memref<32x128xbf16, #tpu.memory_space<vmem>>, vector<32x128xbf16>
    %cst = arith.constant dense<0.000000e+00> : vector<16x128xf32>
    %3 = tpu.matmul %1, %2, %cst {dimension_numbers = #tpu.dot_dimension_numbers<[1], [0], [0], [1], [0, 0, 1, 1], [], []>} : vector<16x32xbf16>, vector<32x128xbf16>, vector<16x128xf32> -> vector<16x128xf32>
    %c0_3 = arith.constant 0 : index
    %c0_4 = arith.constant 0 : index
    %4 = vector.load %arg3[%c0_3, %c0_4] : memref<1x128xf32, #tpu.memory_space<vmem>>, vector<1x128xf32>
    %5 = vector.broadcast %4 : vector<1x128xf32> to vector<16x128xf32>
    %6 = arith.addf %3, %5 : vector<16x128xf32>
    %c0_5 = arith.constant 0 : index
    %c0_6 = arith.constant 0 : index
    %7 = vector.load %arg4[%c0_5, %c0_6] : memref<16x128xf32, #tpu.memory_space<vmem>>, vector<16x128xf32>
    tpu.vector_store %arg4[%c0_5, %c0_6], %6 {strides = array<i32>} : memref<16x128xf32, #tpu.memory_space<vmem>>, vector<16x128xf32>,
    return
  }
  func.func @transform_0(%arg0: i32) -> (i32, i32) {
    %c0_i32 = arith.constant 0 : i32
    %c0_i32_0 = arith.constant 0 : i32
    return %arg0, %c0_i32 : i32, i32
  }
  func.func @transform_1(%arg0: i32) -> (i32, i32) {
    %c0_i32 = arith.constant 0 : i32
    %c0_i32_0 = arith.constant 0 : i32
    %c0_i32_1 = arith.constant 0 : i32
    return %c0_i32, %c0_i32_0 : i32, i32
  }
  func.func @transform_2(%arg0: i32) -> (i32, i32) {
    %c0_i32 = arith.constant 0 : i32
    %c0_i32_0 = arith.constant 0 : i32
    %c0_i32_1 = arith.constant 0 : i32
    return %c0_i32, %c0_i32_0 : i32, i32
  }
  func.func @transform_3(%arg0: i32) -> (i32, i32) {
    %c0_i32 = arith.constant 0 : i32
    %c0_i32_0 = arith.constant 0 : i32
    return %arg0, %c0_i32 : i32, i32
  }
}

module attributes {stable_mosaic.version = 11 : i64} {
  func.func @kernel(%arg0: i32, %arg1: memref<16x32xf32, #tpu.memory_space<vmem>>, %arg2: memref<32x128xbf16, #tpu.memory_space<vmem>>, %arg3: memref<1x128xf32, #tpu.memory_space<vmem>>, %arg4: memref<16x128xf32, #tpu.memory_space<vmem>>) attributes {dimension_semantics = [#tpu.dimension_semantics<parallel>], iteration_bounds = array<i64: 1>, scalar_prefetch = 0 : i64, scratch_operands = 0 : i64, tpu.core_type = #tpu.core_type<tc>, window_params = [{transform_indices = @transform_0, window_bounds = array<i64: 16, 32>}, {pipeline_mode = #tpu.pipeline_mode<synchronous>, transform_indices = @transform_1, window_bounds = array<i64: 32, 128>}, {pipeline_mode = #tpu.pipeline_mode<synchronous>, transform_indices = @transform_2, window_bounds = array<i64: 1, 128>}, {transform_indices = @transform_3, window_bounds = array<i64: 16, 128>}]} {
    %c0 = arith.constant 0 : index
    %c0_0 = arith.constant 0 : index
    %0 = vector.load %arg1[%c0, %c0_0] : memref<16x32xf32, #tpu.memory_space<vmem>>, vector<16x32xf32>
    %1 = arith.truncf %0 : vector<16x32xf32> to vector<16x32xbf16>
    %c0_1 = arith.constant 0 : index
    %c0_2 = arith.constant 0 : index
    %2 = vector.load %arg2[%c0_1, %c0_2] : memref<32x128xbf16, #tpu.memory_space<vmem>>, vector<32x128xbf16>
    %cst = arith.constant dense<0.000000e+00> : vector<16x128xf32>
    %3 = tpu.matmul %1, %2, %cst {dimension_numbers = #tpu.dot_dimension_numbers<[1], [0], [0], [1], [0, 0, 1, 1], [], []>} : vector<16x32xbf16>, vector<32x128xbf16>, vector<16x128xf32> -> vector<16x128xf32>
    %c0_3 = arith.constant 0 : index
    %c0_4 = arith.constant 0 : index
    %4 = vector.load %arg3[%c0_3, %c0_4] : memref<1x128xf32, #tpu.memory_space<vmem>>, vector<1x128xf32>
    %5 = vector.broadcast %4 : vector<1x128xf32> to vector<16x128xf32>
    %6 = arith.addf %3, %5 : vector<16x128xf32>
    %c0_5 = arith.constant 0 : index
    %c0_6 = arith.constant 0 : index
    %7 = vector.load %arg4[%c0_5, %c0_6] : memref<16x128xf32, #tpu.memory_space<vmem>>, vector<16x128xf32>
    tpu.vector_store %arg4[%c0_5, %c0_6], %6 {strides = array<i32>} : memref<16x128xf32, #tpu.memory_space<vmem>>, vector<16x128xf32>,
    return
  }
  func.func @transform_0(%arg0: i32) -> (i32, i32) {
    %c0_i32 = arith.constant 0 : i32
    %c0_i32_0 = arith.constant 0 : i32
    return %arg0, %c0_i32 : i32, i32
  }
  func.func @transform_1(%arg0: i32) -> (i32, i32) {
    %c0_i32 = arith.constant 0 : i32
    %c0_i32_0 = arith.constant 0 : i32
    %c0_i32_1 = arith.constant 0 : i32
    return %c0_i32, %c0_i32_0 : i32, i32
  }
  func.func @transform_2(%arg0: i32) -> (i32, i32) {
    %c0_i32 = arith.constant 0 : i32
    %c0_i32_0 = arith.constant 0 : i32
    %c0_i32_1 = arith.constant 0 : i32
    return %c0_i32, %c0_i32_0 : i32, i32
  }
  func.func @transform_3(%arg0: i32) -> (i32, i32) {
    %c0_i32 = arith.constant 0 : i32
    %c0_i32_0 = arith.constant 0 : i32
    return %arg0, %c0_i32 : i32, i32
  }
}

</mosaic_0001>

<llo_original>
// kernel: tpu_custom_call.1
$region0: #{tpu_custom_call.1}
  #allocation0 [shape = 'u32[]', space=smem, size = 0x4, offset = 0x4, fixed_abs, tag = 'smem constant byte address 0x4 - core index']
  #allocation1 [shape = 'u32[144,128]{1,0:T(1,128)}', space=vmem, size = 0x12000, scoped, tag = 'internal scratch']
  %s0 = inlined_call_operand.hbm [shape: f32[16,32], index: 0, kind: input, shape index: {}]
  %s1 = inlined_call_operand.hbm [shape: bf16[32,128], index: 1, kind: input, shape index: {}]
  %s2 = inlined_call_operand.vmem [shape: f32[1,128], index: 2, kind: input, shape index: {}]
  %s3 = inlined_call_operand.hbm [shape: f32[16,128], index: 3, kind: output, shape index: {}]
  %s4 = sld [smem:[#allocation0]]
  $region30: #{tpu_custom_call.1} parent=0
    _
  %s6 = ssub.s32 1, %s4
  %s7 = scalar_select 0, %s6, %s4
  $region1: #{tpu_custom_call.1} parent=0
    #allocation2 [shape = 'u8[8192]{0}', space=vmem, size = 0x2000, scoped, tag = 'input window, operand 0, single buffered']
    #allocation3 [shape = 's32[1]{0}', space=sflag, size = 0x4, scoped, tag = 'scoped memory for tpu_custom_call.1']
    #allocation4 [shape = 's32[1]{0}', space=sflag, size = 0x4, scoped, tag = 'scoped memory for tpu_custom_call.1']
    #allocation5 [shape = 'u8[8192]{0}', space=vmem, size = 0x2000, scoped, tag = 'input window, operand 1, single buffered']
    #allocation6 [shape = 's32[1]{0}', space=sflag, size = 0x4, scoped, tag = 'scoped memory for tpu_custom_call.1']
    #allocation7 [shape = 'u8[8192]{0}', space=vmem, size = 0x2000, scoped, tag = 'output window, operand 0, single buffered']
    %8 = vsyncpa [#allocation3], 0
    %9 = vsyncpa [#allocation6], 0
    %10 = vsyncpa [#allocation4], 0
    // Predicated region
    $region2: #{tpu_custom_call.1} parent=1 // pred_check
      _
    $region3: #{tpu_custom_call.1} parent=1 // pred_check_branch
      %12 = sbr.rel (0) target = $region5
    $region4: #{tpu_custom_call.1} parent=1 // pred_region
      %s14 = ssub.s32 256, 256
      %15 = vsyncadd [#allocation3], %s14
      %s16 = sshll.u32 [#allocation2], 4
      %s17 = int_to_ptr.vmem [resolvable:$true] %s16
      %22 = dma.hbm_to_vmem [thread:$0]  %s0, 256, %s17, [#allocation3], 128, 128, 8
    $region5: #{tpu_custom_call.1} parent=1 // pred_fallthru
      _
    // Predicated region
    $region6: #{tpu_custom_call.1} parent=1 // pred_check
      _
    $region7: #{tpu_custom_call.1} parent=1 // pred_check_branch
      %24 = sbr.rel (0) target = $region9
    $region8: #{tpu_custom_call.1} parent=1 // pred_region
      %s26 = ssub.s32 256, 256
      %27 = vsyncadd [#allocation6], %s26
      %s28 = sshll.u32 [#allocation5], 4
      %s29 = int_to_ptr.vmem [resolvable:$true] %s28
      %34 = dma.hbm_to_vmem [thread:$0]  %s1, 256, %s29, [#allocation6], 64, 64, 4
    $region9: #{tpu_custom_call.1} parent=1 // pred_fallthru
      _
    // Predicated region
    $region10: #{tpu_custom_call.1} parent=1 // pred_check
      _
    $region11: #{tpu_custom_call.1} parent=1 // pred_check_branch
      %36 = sbr.rel (0) target = $region13
    $region12: #{tpu_custom_call.1} parent=1 // pred_region
      _
    $region13: #{tpu_custom_call.1} parent=1 // pred_fallthru
      _
    // Predicated region
    $region14: #{tpu_custom_call.1} parent=1 // pred_check
      _
    $region15: #{tpu_custom_call.1} parent=1 // pred_check_branch
      %38 = sbr.rel (0) target = $region17
    $region16: #{tpu_custom_call.1} parent=1 // pred_region
      %39 = dma.done [#allocation3], 256
    $region17: #{tpu_custom_call.1} parent=1 // pred_fallthru
      _
    // Predicated region
    $region18: #{tpu_custom_call.1} parent=1 // pred_check
      _
    $region19: #{tpu_custom_call.1} parent=1 // pred_check_branch
      %41 = sbr.rel (0) target = $region21
    $region20: #{tpu_custom_call.1} parent=1 // pred_region
      %42 = dma.done [#allocation6], 256
    $region21: #{tpu_custom_call.1} parent=1 // pred_fallthru
      _
    %v44 = vld [vmem:[#allocation2] sm:$0xff]
    %v45 = vld [vmem:[#allocation2 + $0x8] sm:$0xff]
    %v46 = vpack.c.bf16 %v45, %v44
    %v47 = vld [vmem:[#allocation5] sm:$0xf]
    %v48 = vld [vmem:[#allocation5 + $0x4] sm:$0xf]
    %v49 = vld [vmem:[#allocation5 + $0x8] sm:$0xf]
    %v50 = vld [vmem:[#allocation5 + $0xc] sm:$0xf]
    %v51 = vld [vmem:[%s2] sm:$0x1]
    %v53 = vlaneseq
    %v54 = vshrl.u32 %v53, 7
    %v55 = vsub.s32 0, %v54
    %v56 = vrot.slane %v51, %v55
    %v62 = vunpack.c.l.b16 %v47
    %v63 = vunpack.c.l.b16 %v48
    %v64 = vunpack.c.l.b16 %v49
    %v65 = vunpack.c.l.b16 %v50
    %v66 = vpack.c.b16 %v63, %v62
    %v67 = vpack.c.b16 %v65, %v64
    %vm70 = vcmask 261120
    %v72 = vsel %vm70, %v46, 0
    %74 = vmatprep.subr.bf16.mxu0 0
    %75 = vmatpush1.bf16.msra.mxu0 %v66
    %76 = vmatprep.subr.bf16.mxu0 0
    %77 = vmatpush1.bf16.msra.mxu0 %v67
    %78 = vmatprep.subr.bf16.mxu0 0
    %79 = vmatpush1.bf16.msra.mxu0 0
    %80 = vmatprep.subr.bf16.mxu0 0
    %81 = vmatpush1.bf16.msra.mxu0 0
    %82 = vmatprep.subr.bf16.mxu0 0
    %83 = vmatpush1.bf16.msra.mxu0 0
    %84 = vmatprep.subr.bf16.mxu0 0
    %85 = vmatpush1.bf16.msra.mxu0 0
    %86 = vmatprep.subr.bf16.mxu0 0
    %87 = vmatpush1.bf16.msra.mxu0 0
    %88 = vmatprep.subr.bf16.mxu0 0
    %89 = vmatpush1.bf16.msra.mxu0 0
    %90 = vmatprep.subr.bf16.mxu0 0
    %91 = vmatpush1.bf16.msra.mxu0 0
    %92 = vmatprep.subr.bf16.mxu0 0
    %93 = vmatpush1.bf16.msra.mxu0 0
    %94 = vmatprep.subr.bf16.mxu0 0
    %95 = vmatpush1.bf16.msra.mxu0 0
    %96 = vmatprep.subr.bf16.mxu0 0
    %97 = vmatpush1.bf16.msra.mxu0 0
    %98 = vmatprep.subr.bf16.mxu0 0
    %99 = vmatpush1.bf16.msra.mxu0 0
    %100 = vmatprep.subr.bf16.mxu0 0
    %101 = vmatpush1.bf16.msra.mxu0 0
    %102 = vmatprep.subr.bf16.mxu0 0
    %103 = vmatpush1.bf16.msra.mxu0 0
    %104 = vmatprep.subr.bf16.mxu0 0
    %105 = vmatpush1.bf16.msra.mxu0 0
    %106 = vmatprep.mubr.bf16.mxu0 0
    %107 = vmatmul.mubr.bf16.gmra.mrb[0].mxu0 %v72
    %v108 = vpop.f32.mrb[0].mxu0
    %v109 = vadd.f32 %v56, %v108
    %v110 = vpop.f32.mrb[0].mxu0
    %v111 = vpop.f32.mrb[0].mxu0
    %v112 = vadd.f32 %v56, %v111
    %v113 = vpop.f32.mrb[0].mxu0
    %114 = vdwg.mxu0
    %115 = vst [vmem:[#allocation7] sm:$0xff] %v109
    %116 = vst [vmem:[#allocation7 + $0x8] sm:$0xff] %v112
    // Predicated region
    $region22: #{tpu_custom_call.1} parent=1 // pred_check
      _
    $region23: #{tpu_custom_call.1} parent=1 // pred_check_branch
      %118 = sbr.rel (0) target = $region25
    $region24: #{tpu_custom_call.1} parent=1 // pred_region
      %s120 = ssub.s32 256, 256
      %121 = vsyncadd [#allocation4], %s120
      %s122 = sshll.u32 [#allocation7], 4
      %s123 = int_to_ptr.vmem [resolvable:$true] %s122
      %128 = dma.vmem_to_hbm [thread:$0]  %s123, 256, %s3, [#allocation4], 128, 128, 8
    $region25: #{tpu_custom_call.1} parent=1 // pred_fallthru
      _
    // Predicated region
    $region26: #{tpu_custom_call.1} parent=1 // pred_check
      _
    $region27: #{tpu_custom_call.1} parent=1 // pred_check_branch
      %130 = sbr.rel (0) target = $region29
    $region28: #{tpu_custom_call.1} parent=1 // pred_region
      %131 = dma.done [#allocation4], 256
    $region29: #{tpu_custom_call.1} parent=1 // pred_fallthru
      _
    %132 = vsyncpa [#allocation3], 1
    %133 = vsyncpa [#allocation6], 1
    %134 = vsyncpa [#allocation4], 1

// kernel: tpu_custom_call.1
$region0: #{tpu_custom_call.1}
  #allocation0 [shape = 'u32[]', space=smem, size = 0x4, offset = 0x4, fixed_abs, tag = 'smem constant byte address 0x4 - core index']
  #allocation1 [shape = 'u32[144,128]{1,0:T(1,128)}', space=vmem, size = 0x12000, scoped, tag = 'internal scratch']
  %s0 = inlined_call_operand.hbm [shape: f32[16,32], index: 0, kind: input, shape index: {}]
  %s1 = inlined_call_operand.hbm [shape: bf16[32,128], index: 1, kind: input, shape index: {}]
  %s2 = inlined_call_operand.vmem [shape: f32[1,128], index: 2, kind: input, shape index: {}]
  %s3 = inlined_call_operand.hbm [shape: f32[16,128], index: 3, kind: output, shape index: {}]
  %s4 = sld [smem:[#allocation0]]
  $region30: #{tpu_custom_call.1} parent=0
    _
  %s6 = ssub.s32 1, %s4
  %s7 = scalar_select 0, %s6, %s4
  $region1: #{tpu_custom_call.1} parent=0
    #allocation2 [shape = 'u8[8192]{0}', space=vmem, size = 0x2000, scoped, tag = 'input window, operand 0, single buffered']
    #allocation3 [shape = 's32[1]{0}', space=sflag, size = 0x4, scoped, tag = 'scoped memory for tpu_custom_call.1']
    #allocation4 [shape = 's32[1]{0}', space=sflag, size = 0x4, scoped, tag = 'scoped memory for tpu_custom_call.1']
    #allocation5 [shape = 'u8[8192]{0}', space=vmem, size = 0x2000, scoped, tag = 'input window, operand 1, single buffered']
    #allocation6 [shape = 's32[1]{0}', space=sflag, size = 0x4, scoped, tag = 'scoped memory for tpu_custom_call.1']
    #allocation7 [shape = 'u8[8192]{0}', space=vmem, size = 0x2000, scoped, tag = 'output window, operand 0, single buffered']
    %8 = vsyncpa [#allocation3], 0
    %9 = vsyncpa [#allocation6], 0
    %10 = vsyncpa [#allocation4], 0
    // Predicated region
    $region2: #{tpu_custom_call.1} parent=1 // pred_check
      _
    $region3: #{tpu_custom_call.1} parent=1 // pred_check_branch
      %12 = sbr.rel (0) target = $region5
    $region4: #{tpu_custom_call.1} parent=1 // pred_region
      %s14 = ssub.s32 256, 256
      %15 = vsyncadd [#allocation3], %s14
      %s16 = sshll.u32 [#allocation2], 4
      %s17 = int_to_ptr.vmem [resolvable:$true] %s16
      %22 = dma.hbm_to_vmem [thread:$0]  %s0, 256, %s17, [#allocation3], 128, 128, 8
    $region5: #{tpu_custom_call.1} parent=1 // pred_fallthru
      _
    // Predicated region
    $region6: #{tpu_custom_call.1} parent=1 // pred_check
      _
    $region7: #{tpu_custom_call.1} parent=1 // pred_check_branch
      %24 = sbr.rel (0) target = $region9
    $region8: #{tpu_custom_call.1} parent=1 // pred_region
      %s26 = ssub.s32 256, 256
      %27 = vsyncadd [#allocation6], %s26
      %s28 = sshll.u32 [#allocation5], 4
      %s29 = int_to_ptr.vmem [resolvable:$true] %s28
      %34 = dma.hbm_to_vmem [thread:$0]  %s1, 256, %s29, [#allocation6], 64, 64, 4
    $region9: #{tpu_custom_call.1} parent=1 // pred_fallthru
      _
    // Predicated region
    $region10: #{tpu_custom_call.1} parent=1 // pred_check
      _
    $region11: #{tpu_custom_call.1} parent=1 // pred_check_branch
      %36 = sbr.rel (0) target = $region13
    $region12: #{tpu_custom_call.1} parent=1 // pred_region
      _
    $region13: #{tpu_custom_call.1} parent=1 // pred_fallthru
      _
    // Predicated region
    $region14: #{tpu_custom_call.1} parent=1 // pred_check
      _
    $region15: #{tpu_custom_call.1} parent=1 // pred_check_branch
      %38 = sbr.rel (0) target = $region17
    $region16: #{tpu_custom_call.1} parent=1 // pred_region
      %39 = dma.done [#allocation3], 256
    $region17: #{tpu_custom_call.1} parent=1 // pred_fallthru
      _
    // Predicated region
    $region18: #{tpu_custom_call.1} parent=1 // pred_check
      _
    $region19: #{tpu_custom_call.1} parent=1 // pred_check_branch
      %41 = sbr.rel (0) target = $region21
    $region20: #{tpu_custom_call.1} parent=1 // pred_region
      %42 = dma.done [#allocation6], 256
    $region21: #{tpu_custom_call.1} parent=1 // pred_fallthru
      _
    %v44 = vld [vmem:[#allocation2] sm:$0xff]
    %v45 = vld [vmem:[#allocation2 + $0x8] sm:$0xff]
    %v46 = vpack.c.bf16 %v45, %v44
    %v47 = vld [vmem:[#allocation5] sm:$0xf]
    %v48 = vld [vmem:[#allocation5 + $0x4] sm:$0xf]
    %v49 = vld [vmem:[#allocation5 + $0x8] sm:$0xf]
    %v50 = vld [vmem:[#allocation5 + $0xc] sm:$0xf]
    %v51 = vld [vmem:[%s2] sm:$0x1]
    %v53 = vlaneseq
    %v54 = vshrl.u32 %v53, 7
    %v55 = vsub.s32 0, %v54
    %v56 = vrot.slane %v51, %v55
    %v62 = vunpack.c.l.b16 %v47
    %v63 = vunpack.c.l.b16 %v48
    %v64 = vunpack.c.l.b16 %v49
    %v65 = vunpack.c.l.b16 %v50
    %v66 = vpack.c.b16 %v63, %v62
    %v67 = vpack.c.b16 %v65, %v64
    %vm70 = vcmask 261120
    %v72 = vsel %vm70, %v46, 0
    %74 = vmatprep.subr.bf16.mxu0 0
    %75 = vmatpush1.bf16.msra.mxu0 %v66
    %76 = vmatprep.subr.bf16.mxu0 0
    %77 = vmatpush1.bf16.msra.mxu0 %v67
    %78 = vmatprep.subr.bf16.mxu0 0
    %79 = vmatpush1.bf16.msra.mxu0 0
    %80 = vmatprep.subr.bf16.mxu0 0
    %81 = vmatpush1.bf16.msra.mxu0 0
    %82 = vmatprep.subr.bf16.mxu0 0
    %83 = vmatpush1.bf16.msra.mxu0 0
    %84 = vmatprep.subr.bf16.mxu0 0
    %85 = vmatpush1.bf16.msra.mxu0 0
    %86 = vmatprep.subr.bf16.mxu0 0
    %87 = vmatpush1.bf16.msra.mxu0 0
    %88 = vmatprep.subr.bf16.mxu0 0
    %89 = vmatpush1.bf16.msra.mxu0 0
    %90 = vmatprep.subr.bf16.mxu0 0
    %91 = vmatpush1.bf16.msra.mxu0 0
    %92 = vmatprep.subr.bf16.mxu0 0
    %93 = vmatpush1.bf16.msra.mxu0 0
    %94 = vmatprep.subr.bf16.mxu0 0
    %95 = vmatpush1.bf16.msra.mxu0 0
    %96 = vmatprep.subr.bf16.mxu0 0
    %97 = vmatpush1.bf16.msra.mxu0 0
    %98 = vmatprep.subr.bf16.mxu0 0
    %99 = vmatpush1.bf16.msra.mxu0 0
    %100 = vmatprep.subr.bf16.mxu0 0
    %101 = vmatpush1.bf16.msra.mxu0 0
    %102 = vmatprep.subr.bf16.mxu0 0
    %103 = vmatpush1.bf16.msra.mxu0 0
    %104 = vmatprep.subr.bf16.mxu0 0
    %105 = vmatpush1.bf16.msra.mxu0 0
    %106 = vmatprep.mubr.bf16.mxu0 0
    %107 = vmatmul.mubr.bf16.gmra.mrb[0].mxu0 %v72
    %v108 = vpop.f32.mrb[0].mxu0
    %v109 = vadd.f32 %v56, %v108
    %v110 = vpop.f32.mrb[0].mxu0
    %v111 = vpop.f32.mrb[0].mxu0
    %v112 = vadd.f32 %v56, %v111
    %v113 = vpop.f32.mrb[0].mxu0
    %114 = vdwg.mxu0
    %115 = vst [vmem:[#allocation7] sm:$0xff] %v109
    %116 = vst [vmem:[#allocation7 + $0x8] sm:$0xff] %v112
    // Predicated region
    $region22: #{tpu_custom_call.1} parent=1 // pred_check
      _
    $region23: #{tpu_custom_call.1} parent=1 // pred_check_branch
      %118 = sbr.rel (0) target = $region25
    $region24: #{tpu_custom_call.1} parent=1 // pred_region
      %s120 = ssub.s32 256, 256
      %121 = vsyncadd [#allocation4], %s120
      %s122 = sshll.u32 [#allocation7], 4
      %s123 = int_to_ptr.vmem [resolvable:$true] %s122
      %128 = dma.vmem_to_hbm [thread:$0]  %s123, 256, %s3, [#allocation4], 128, 128, 8
    $region25: #{tpu_custom_call.1} parent=1 // pred_fallthru
      _
    // Predicated region
    $region26: #{tpu_custom_call.1} parent=1 // pred_check
      _
    $region27: #{tpu_custom_call.1} parent=1 // pred_check_branch
      %130 = sbr.rel (0) target = $region29
    $region28: #{tpu_custom_call.1} parent=1 // pred_region
      %131 = dma.done [#allocation4], 256
    $region29: #{tpu_custom_call.1} parent=1 // pred_fallthru
      _
    %132 = vsyncpa [#allocation3], 1
    %133 = vsyncpa [#allocation6], 1
    %134 = vsyncpa [#allocation4], 1

</llo_original>
